<compile_context>
chip_gen: v7x
topology: tpu7x:2x2x1
jax: 0.10.0
libtpu: 0.0.40
codegen_flags: <defaults>
</compile_context>

<pallas_src>
import functools

import numpy as np
import jax
import jax.numpy as jnp
from jax.experimental import pallas as pl
from jax.experimental.pallas import tpu as pltpu

# ---------------------------------------------------------------------------
# SSIM constants (torchmetrics StructuralSimilarityIndexMeasure defaults)
# ---------------------------------------------------------------------------
DATA_RANGE = 1.0
K1, K2 = 0.01, 0.03
C1 = float((K1 * DATA_RANGE) ** 2)
C2 = float((K2 * DATA_RANGE) ** 2)
SIGMA = 1.5
KERNEL_SIZE = 11                      # torchmetrics default gaussian kernel
PAD = (KERNEL_SIZE - 1) // 2          # = 5
BLOCK_SIZE = 8

ROW_TILE = 512                        # TM: rows of 128 lanes per grid step
MAX_PARTIALS = 8                      # G: parallel partial-sum groups
VMEM_LIMIT_BYTES = 32 * 1024 * 1024   # explicit scoped-VMEM budget (fits v7x)


def _round_up(x: int, m: int) -> int:
    return ((x + m - 1) // m) * m


# ---------------------------------------------------------------------------
# Host-side: the (reflect-pad + Gaussian) linear operator on flattened tiles
# ---------------------------------------------------------------------------
def _gaussian_1d(kernel_size: int, sigma: float) -> np.ndarray:
    dist = np.arange((1 - kernel_size) / 2, (1 + kernel_size) / 2, 1.0)
    g = np.exp(-((dist / sigma) ** 2) / 2.0)
    return g / g.sum()


def _smoothing_matrix(block: int) -> np.ndarray:
    """W (block x block): reflect-pad(5) + 1D Gaussian(11) valid conv as a linear map."""
    g = _gaussian_1d(KERNEL_SIZE, SIGMA)
    padded_len = block + 2 * PAD
    refl = np.zeros(padded_len, dtype=np.int64)
    for t in range(padded_len):
        u = t - PAD
        if u < 0:
            refl[t] = -u                      # torch "reflect" (edge not repeated)
        elif u >= block:
            refl[t] = 2 * block - 2 - u
        else:
            refl[t] = u
    W = np.zeros((block, block), dtype=np.float64)
    for p in range(block):
        for a in range(KERNEL_SIZE):
            W[p, refl[p + a]] += g[a]
    return W


def _packed_smoothing_matrix(block: int, pack: int, dtype) -> jnp.ndarray:
    """blockdiag of `pack` copies of (kron(W, W))^T: mu_row = tile_row @ W2T_packed."""
    W = _smoothing_matrix(block)
    W2T = np.kron(W, W).T                     # (bs*bs, bs*bs)
    t = block * block
    out = np.zeros((pack * t, pack * t), dtype=np.float64)
    for p in range(pack):
        out[p * t:(p + 1) * t, p * t:(p + 1) * t] = W2T
    return jnp.asarray(out, dtype=dtype)


# ---------------------------------------------------------------------------
# Pallas kernel factory
# ---------------------------------------------------------------------------
def _make_ssim_kernel(tm: int, lanes: int, steps: int, n_valid: int, use_bf16: bool):
    full_rows = n_valid // lanes              # rows entirely made of real elements
    rem_lanes = n_valid % lanes               # real lanes in the first partial row

    def kernel(w2t_ref, x_ref, y_ref, out_ref):
        g = pl.program_id(0)                  # parallel partial-sum group
        s = pl.program_id(1)                  # reduction step within the group

        @pl.when(s == 0)
        def _init():
            out_ref[...] = jnp.zeros_like(out_ref)

        w2t = w2t_ref[...]                    # (lanes, lanes), matmul dtype
        mm_dtype = w2t.dtype
        x = x_ref[...].astype(jnp.float32)    # (tm, lanes)
        y = y_ref[...].astype(jnp.float32)

        def smooth(z):
            return jnp.dot(z.astype(mm_dtype), w2t,
                           preferred_element_type=jnp.float32)

        mu_x = smooth(x)
        mu_y = smooth(y)
        e_xx = smooth(x * x)
        e_yy = smooth(y * y)
        e_xy = smooth(x * y)

        sigma_x = e_xx - mu_x * mu_x
        sigma_y = e_yy - mu_y * mu_y
        sigma_xy = e_xy - mu_x * mu_y

        num = (2.0 * mu_x * mu_y + C1) * (2.0 * sigma_xy + C2)
        den = (mu_x * mu_x + mu_y * mu_y + C1) * (sigma_x + sigma_y + C2)
        if use_bf16:
            # approx reciprocal runs on the EUP slot (frees VALU, esp. on v5e)
            ssim_map = num * pl.reciprocal(den, approx=True)
        else:
            ssim_map = num / den

        # Mask zero-padded tail rows / lanes (they would contribute ssim == 1).
        row0 = (g * steps + s) * tm
        row = row0 + jax.lax.broadcasted_iota(jnp.int32, (tm, lanes), 0)
        lane = jax.lax.broadcasted_iota(jnp.int32, (tm, lanes), 1)
        valid = (row < full_rows) | ((row == full_rows) & (lane < rem_lanes))
        ssim_map = jnp.where(valid, ssim_map, 0.0)

        # Per-lane partial sums accumulate in the resident f32 output block.
        out_ref[...] += jnp.sum(ssim_map, axis=0, keepdims=True)

    return kernel


# ---------------------------------------------------------------------------
# Wrapper: blockify / pad (layout plumbing), Pallas call, final mean
# ---------------------------------------------------------------------------
def _blockify_packed(img, bs, pack, n_rows, dtype):
    """(B, C, H, W) -> (n_rows, pack*bs*bs) rows of flattened spatial tiles (+ zero pad)."""
    B, C, H, W = img.shape
    nby, nbx = H // bs, W // bs
    img = img[:, :, : nby * bs, : nbx * bs]            # drop partial blocks (PyTorch loop does too)
    t = img.reshape(B, C, nby, bs, nbx, bs)
    t = jnp.transpose(t, (0, 1, 2, 4, 3, 5))           # (B, C, nby, nbx, bs, bs)
    flat = t.reshape(-1).astype(dtype)                 # tile-major, row-major inside tile
    lanes = pack * bs * bs
    pad = n_rows * lanes - flat.shape[0]
    if pad:
        flat = jnp.pad(flat, (0, pad))
    return flat.reshape(n_rows, lanes)


@functools.partial(jax.jit, static_argnames=("block_size", "use_bf16"))
def ssim_loss(inputs: jnp.ndarray, targets: jnp.ndarray,
              block_size: int = BLOCK_SIZE, use_bf16: bool = True):
    assert inputs.shape == targets.shape and inputs.ndim == 4
    B, C, H, W = inputs.shape
    bs = block_size
    nby, nbx = H // bs, W // bs
    tile = bs * bs
    n_tiles = B * C * nby * nbx
    n_valid = n_tiles * tile                           # true element count (original shape)

    # pack as many tiles as fit into a 128-lane row
    pack = (128 // tile) if (tile <= 128 and 128 % tile == 0) else 1
    lanes = pack * tile
    mm_dtype = jnp.bfloat16 if use_bf16 else jnp.float32

    # grid sizing: (G parallel groups) x (S reduction steps), TM rows per step
    n_rows_exact = pl.cdiv(n_valid, lanes)
    tm = min(ROW_TILE, _round_up(n_rows_exact, 8))
    base_steps = pl.cdiv(n_rows_exact, tm)
    g_dim = min(MAX_PARTIALS, base_steps)
    steps = pl.cdiv(base_steps, g_dim)
    n_rows = g_dim * steps * tm                        # padded row count

    x_tiles = _blockify_packed(inputs, bs, pack, n_rows, mm_dtype)   # "true" blocks
    y_tiles = _blockify_packed(targets, bs, pack, n_rows, mm_dtype)  # "predicted" blocks
    w2t = _packed_smoothing_matrix(bs, pack, mm_dtype)

    kernel = _make_ssim_kernel(tm, lanes, steps, n_valid, use_bf16)

    partials = pl.pallas_call(
        kernel,
        out_shape=jax.ShapeDtypeStruct((g_dim, lanes), jnp.float32),
        grid=(g_dim, steps),
        in_specs=[
            pl.BlockSpec((lanes, lanes), lambda g, s: (0, 0)),          # weight: resident
            # x/y tiles stream through VMEM (double-buffered); bump to
            # pipeline_mode=pl.Buffered(3) if the bf16 path exposes DMA latency.
            pl.BlockSpec((tm, lanes), lambda g, s: (g * steps + s, 0)),
            pl.BlockSpec((tm, lanes), lambda g, s: (g * steps + s, 0)),
        ],
        out_specs=pl.BlockSpec((1, lanes), lambda g, s: (g, 0)),        # per-group partial sums
        compiler_params=pltpu.CompilerParams(
            dimension_semantics=("parallel", "arbitrary"),
            vmem_limit_bytes=VMEM_LIMIT_BYTES,
            allow_input_fusion=[False, True, True],
        ),
    )(w2t, x_tiles, y_tiles)

    # mean(1 - ssim) over all blocks / batch / channels / pixels.
    # TODO(synk): torchmetrics additionally crops the pad border (5 px) of the SSIM map
    # before averaging; for 8x8 blocks with an 11x11 window that crop is empty (the
    # PyTorch module would return NaN), so we average the full per-block SSIM map instead.
    return 1.0 - jnp.sum(partials, dtype=jnp.float32) / n_valid


if __name__ == "__main__":
    key = jax.random.PRNGKey(0)
    k_in, k_tg = jax.random.split(key)
    B, C, H, W = 2, 4, 16, 16
    inputs = jax.random.uniform(k_in, (B, C, H, W), dtype=jnp.float32)
    targets = jax.random.uniform(k_tg, (B, C, H, W), dtype=jnp.float32)

    # fast (bf16-matmul) path
    loss = ssim_loss(inputs, targets)
    jax.block_until_ready(loss)
    assert jnp.isfinite(loss), "bf16-path loss is not finite"

    # f32 reference path + cross-validation of the bf16 drift
    loss_f32 = ssim_loss(inputs, targets, use_bf16=False)
    jax.block_until_ready(loss_f32)
    assert jnp.isfinite(loss_f32), "f32-path loss is not finite"
    assert abs(float(loss) - float(loss_f32)) < 5e-2, (
        f"bf16 vs f32 mismatch: {float(loss)} vs {float(loss_f32)}")

    # sanity: identical images -> SSIM == 1 -> loss == 0
    loss_same_f32 = ssim_loss(inputs, inputs, use_bf16=False)
    jax.block_until_ready(loss_same_f32)
    assert abs(float(loss_same_f32)) < 1e-6, (
        f"f32 self-SSIM loss should be ~0, got {float(loss_same_f32)}")
    loss_same_bf16 = ssim_loss(inputs, inputs)
    jax.block_until_ready(loss_same_bf16)
    assert abs(float(loss_same_bf16)) < 2e-2, (
        f"bf16 self-SSIM loss should be ~0, got {float(loss_same_bf16)}")

    print("KERNEL_OK")
</pallas_src>

<mosaic_0001>
module attributes {stable_mosaic.version = 11 : i64} {
  func.func @kernel(%arg0: i32, %arg1: i32, %arg2: memref<128x128xbf16, #tpu.memory_space<vmem>>, %arg3: memref<16x128xbf16, #tpu.memory_space<vmem>>, %arg4: memref<16x128xbf16, #tpu.memory_space<vmem>>, %arg5: memref<1x128xf32, #tpu.memory_space<vmem>>) attributes {dimension_semantics = [#tpu.dimension_semantics<parallel>, #tpu.dimension_semantics<arbitrary>], iteration_bounds = array<i64: 1, 1>, scalar_prefetch = 0 : i64, scratch_operands = 0 : i64, tpu.core_type = #tpu.core_type<tc>, window_params = [{pipeline_mode = #tpu.pipeline_mode<synchronous>, transform_indices = @transform_0, window_bounds = array<i64: 128, 128>}, {transform_indices = @transform_1, window_bounds = array<i64: 16, 128>}, {transform_indices = @transform_2, window_bounds = array<i64: 16, 128>}, {transform_indices = @transform_3, window_bounds = array<i64: 1, 128>}]} {
    %c0_i32 = arith.constant 0 : i32
    %0 = arith.cmpi eq, %arg1, %c0_i32 : i32
    %1 = arith.extui %0 : i1 to i32
    %c0_i32_0 = arith.constant 0 : i32
    %2 = arith.cmpi ne, %1, %c0_i32_0 : i32
    scf.if %2 {
      %cst_25 = arith.constant 0.000000e+00 : f32
      %70 = vector.broadcast %cst_25 : f32 to vector<1x128xf32>
      %c0_26 = arith.constant 0 : index
      %c0_27 = arith.constant 0 : index
      %71 = vector.load %arg5[%c0_26, %c0_27] : memref<1x128xf32, #tpu.memory_space<vmem>>, vector<1x128xf32>
      tpu.vector_store %arg5[%c0_26, %c0_27], %70 {strides = array<i32>} : memref<1x128xf32, #tpu.memory_space<vmem>>, vector<1x128xf32>,
    } else {
    }
    %c0 = arith.constant 0 : index
    %c0_1 = arith.constant 0 : index
    %3 = vector.load %arg2[%c0, %c0_1] : memref<128x128xbf16, #tpu.memory_space<vmem>>, vector<128x128xbf16>
    %c0_2 = arith.constant 0 : index
    %c0_3 = arith.constant 0 : index
    %4 = vector.load %arg3[%c0_2, %c0_3] : memref<16x128xbf16, #tpu.memory_space<vmem>>, vector<16x128xbf16>
    %5 = arith.extf %4 : vector<16x128xbf16> to vector<16x128xf32>
    %c0_4 = arith.constant 0 : index
    %c0_5 = arith.constant 0 : index
    %6 = vector.load %arg4[%c0_4, %c0_5] : memref<16x128xbf16, #tpu.memory_space<vmem>>, vector<16x128xbf16>
    %7 = arith.extf %6 : vector<16x128xbf16> to vector<16x128xf32>
    %8 = arith.truncf %5 : vector<16x128xf32> to vector<16x128xbf16>
    %cst = arith.constant dense<0.000000e+00> : vector<16x128xf32>
    %9 = tpu.matmul %8, %3, %cst {dimension_numbers = #tpu.dot_dimension_numbers<[1], [0], [0], [1], [0, 0, 1, 1], [], []>} : vector<16x128xbf16>, vector<128x128xbf16>, vector<16x128xf32> -> vector<16x128xf32>
    %10 = arith.truncf %7 : vector<16x128xf32> to vector<16x128xbf16>
    %cst_6 = arith.constant dense<0.000000e+00> : vector<16x128xf32>
    %11 = tpu.matmul %10, %3, %cst_6 {dimension_numbers = #tpu.dot_dimension_numbers<[1], [0], [0], [1], [0, 0, 1, 1], [], []>} : vector<16x128xbf16>, vector<128x128xbf16>, vector<16x128xf32> -> vector<16x128xf32>
    %12 = arith.mulf %5, %5 : vector<16x128xf32>
    %13 = arith.truncf %12 : vector<16x128xf32> to vector<16x128xbf16>
    %cst_7 = arith.constant dense<0.000000e+00> : vector<16x128xf32>
    %14 = tpu.matmul %13, %3, %cst_7 {dimension_numbers = #tpu.dot_dimension_numbers<[1], [0], [0], [1], [0, 0, 1, 1], [], []>} : vector<16x128xbf16>, vector<128x128xbf16>, vector<16x128xf32> -> vector<16x128xf32>
    %15 = arith.mulf %7, %7 : vector<16x128xf32>
    %16 = arith.truncf %15 : vector<16x128xf32> to vector<16x128xbf16>
    %cst_8 = arith.constant dense<0.000000e+00> : vector<16x128xf32>
    %17 = tpu.matmul %16, %3, %cst_8 {dimension_numbers = #tpu.dot_dimension_numbers<[1], [0], [0], [1], [0, 0, 1, 1], [], []>} : vector<16x128xbf16>, vector<128x128xbf16>, vector<16x128xf32> -> vector<16x128xf32>
    %18 = arith.mulf %5, %7 : vector<16x128xf32>
    %19 = arith.truncf %18 : vector<16x128xf32> to vector<16x128xbf16>
    %cst_9 = arith.constant dense<0.000000e+00> : vector<16x128xf32>
    %20 = tpu.matmul %19, %3, %cst_9 {dimension_numbers = #tpu.dot_dimension_numbers<[1], [0], [0], [1], [0, 0, 1, 1], [], []>} : vector<16x128xbf16>, vector<128x128xbf16>, vector<16x128xf32> -> vector<16x128xf32>
    %21 = arith.mulf %9, %9 : vector<16x128xf32>
    %22 = arith.subf %14, %21 : vector<16x128xf32>
    %23 = arith.mulf %11, %11 : vector<16x128xf32>
    %24 = arith.subf %17, %23 : vector<16x128xf32>
    %25 = arith.mulf %9, %11 : vector<16x128xf32>
    %26 = arith.subf %20, %25 : vector<16x128xf32>
    %cst_10 = arith.constant 2.000000e+00 : f32
    %27 = vector.broadcast %cst_10 : f32 to vector<16x128xf32>
    %28 = arith.mulf %27, %9 : vector<16x128xf32>
    %29 = arith.mulf %28, %11 : vector<16x128xf32>
    %cst_11 = arith.constant 9.99999974E-5 : f32
    %30 = vector.broadcast %cst_11 : f32 to vector<16x128xf32>
    %31 = arith.addf %29, %30 : vector<16x128xf32>
    %cst_12 = arith.constant 2.000000e+00 : f32
    %32 = vector.broadcast %cst_12 : f32 to vector<16x128xf32>
    %33 = arith.mulf %32, %26 : vector<16x128xf32>
    %cst_13 = arith.constant 8.99999984E-4 : f32
    %34 = vector.broadcast %cst_13 : f32 to vector<16x128xf32>
    %35 = arith.addf %33, %34 : vector<16x128xf32>
    %36 = arith.mulf %31, %35 : vector<16x128xf32>
    %37 = arith.mulf %9, %9 : vector<16x128xf32>
    %38 = arith.mulf %11, %11 : vector<16x128xf32>
    %39 = arith.addf %37, %38 : vector<16x128xf32>
    %cst_14 = arith.constant 9.99999974E-5 : f32
    %40 = vector.broadcast %cst_14 : f32 to vector<16x128xf32>
    %41 = arith.addf %39, %40 : vector<16x128xf32>
    %42 = arith.addf %22, %24 : vector<16x128xf32>
    %cst_15 = arith.constant 8.99999984E-4 : f32
    %43 = vector.broadcast %cst_15 : f32 to vector<16x128xf32>
    %44 = arith.addf %42, %43 : vector<16x128xf32>
    %45 = arith.mulf %41, %44 : vector<16x128xf32>
    %46 = tpu.reciprocal %45 {approx = true} : vector<16x128xf32> -> vector<16x128xf32>
    %47 = arith.mulf %36, %46 : vector<16x128xf32>
    %c1_i32 = arith.constant 1 : i32
    %48 = arith.muli %arg0, %c1_i32 : i32
    %49 = arith.addi %48, %arg1 : i32
    %c16_i32 = arith.constant 16 : i32
    %50 = arith.muli %49, %c16_i32 : i32
    %51 = tpu.iota {dimensions = array<i32: 0>} : vector<16x128xi32>
    %52 = vector.broadcast %50 : i32 to vector<16x128xi32>
    %53 = arith.addi %52, %51 : vector<16x128xi32>
    %54 = tpu.iota {dimensions = array<i32: 1>} : vector<16x128xi32>
    %c16_i32_16 = arith.constant 16 : i32
    %55 = vector.broadcast %c16_i32_16 : i32 to vector<16x128xi32>
    %56 = arith.cmpi slt, %53, %55 : vector<16x128xi32>
    %c16_i32_17 = arith.constant 16 : i32
    %57 = vector.broadcast %c16_i32_17 : i32 to vector<16x128xi32>
    %58 = arith.cmpi eq, %53, %57 : vector<16x128xi32>
    %c0_i32_18 = arith.constant 0 : i32
    %59 = vector.broadcast %c0_i32_18 : i32 to vector<16x128xi32>
    %60 = arith.cmpi slt, %54, %59 : vector<16x128xi32>
    %61 = arith.andi %58, %60 : vector<16x128xi1>
    %62 = arith.ori %56, %61 : vector<16x128xi1>
    %cst_19 = arith.constant 0.000000e+00 : f32
    %63 = vector.broadcast %cst_19 : f32 to vector<16x128xf32>
    %64 = arith.select %62, %47, %63 : vector<16x128xi1>, vector<16x128xf32>
    %c0_20 = arith.constant 0 : index
    %c0_21 = arith.constant 0 : index
    %65 = vector.load %arg5[%c0_20, %c0_21] : memref<1x128xf32, #tpu.memory_space<vmem>>, vector<1x128xf32>
    %cst_22 = arith.constant dense<0.000000e+00> : vector<128xf32>
    %66 = vector.multi_reduction <add>, %64, %cst_22 [0] : vector<16x128xf32> to vector<128xf32>
    %67 = vector.shape_cast %66 : vector<128xf32> to vector<1x128xf32>
    %68 = arith.addf %65, %67 : vector<1x128xf32>
    %c0_23 = arith.constant 0 : index
    %c0_24 = arith.constant 0 : index
    %69 = vector.load %arg5[%c0_23, %c0_24] : memref<1x128xf32, #tpu.memory_space<vmem>>, vector<1x128xf32>
    tpu.vector_store %arg5[%c0_23, %c0_24], %68 {strides = array<i32>} : memref<1x128xf32, #tpu.memory_space<vmem>>, vector<1x128xf32>,
    return
  }
  func.func @transform_0(%arg0: i32, %arg1: i32) -> (i32, i32) {
    %c0_i32 = arith.constant 0 : i32
    %c0_i32_0 = arith.constant 0 : i32
    %c0_i32_1 = arith.constant 0 : i32
    return %c0_i32, %c0_i32_0 : i32, i32
  }
  func.func @transform_1(%arg0: i32, %arg1: i32) -> (i32, i32) {
    %c1_i32 = arith.constant 1 : i32
    %0 = arith.muli %arg0, %c1_i32 : i32
    %1 = arith.addi %0, %arg1 : i32
    %c0_i32 = arith.constant 0 : i32
    %c0_i32_0 = arith.constant 0 : i32
    return %1, %c0_i32 : i32, i32
  }
  func.func @transform_2(%arg0: i32, %arg1: i32) -> (i32, i32) {
    %c1_i32 = arith.constant 1 : i32
    %0 = arith.muli %arg0, %c1_i32 : i32
    %1 = arith.addi %0, %arg1 : i32
    %c0_i32 = arith.constant 0 : i32
    %c0_i32_0 = arith.constant 0 : i32
    return %1, %c0_i32 : i32, i32
  }
  func.func @transform_3(%arg0: i32, %arg1: i32) -> (i32, i32) {
    %c0_i32 = arith.constant 0 : i32
    %c0_i32_0 = arith.constant 0 : i32
    return %arg0, %c0_i32 : i32, i32
  }
}

</mosaic_0001>

<llo_original>
// kernel: ssim_loss.1
$region0: #{ssim_loss.1}
  #allocation0 [shape = 'u32[]', space=smem, size = 0x4, offset = 0x4, fixed_abs, tag = 'smem constant byte address 0x4 - core index']
  #allocation1 [shape = 'u32[144,128]{1,0:T(1,128)}', space=vmem, size = 0x12000, scoped, tag = 'internal scratch']
  %s0 = inlined_call_operand.vmem [shape: bf16[128,128], index: 0, kind: input, shape index: {}]
  %s1 = inlined_call_operand.vmem [shape: bf16[16,128], index: 1, kind: input, shape index: {}]
  %s2 = inlined_call_operand.vmem [shape: bf16[16,128], index: 2, kind: input, shape index: {}]
  %s3 = inlined_call_operand.vmem [shape: f32[1,128], index: 3, kind: output, shape index: {}]
  %s4 = sld [smem:[#allocation0]]
  $region26: #{ssim_loss.1} parent=0
    _
  %s6 = ssub.s32 1, %s4
  %s7 = scalar_select 0, %s6, %s4
  // Predicated region
  $region2: #{ssim_loss.1} parent=0 // pred_check
    _
  $region3: #{ssim_loss.1} parent=0 // pred_check_branch
    %9 = sbr.rel (0) target = $region5
  $region4: #{ssim_loss.1} parent=0 // pred_region
    _
  $region5: #{ssim_loss.1} parent=0 // pred_fallthru
    _
  // Predicated region
  $region6: #{ssim_loss.1} parent=0 // pred_check
    _
  $region7: #{ssim_loss.1} parent=0 // pred_check_branch
    %11 = sbr.rel (0) target = $region9
  $region8: #{ssim_loss.1} parent=0 // pred_region
    %s12 = sadd.s32 0, 0
    %s13 = smul.u32 2, %s12
    %p14 = scmp.lt.s32.totalorder %s13, 1
    %s15 = scalar_select %p14, %s13, 1
    %s16 = smul.addr %s15, 4
    %s17 = scalar_lea.vmem %s1, %s16
    %s18 = sadd.s32 0, 0
    %s19 = smul.u32 2, %s18
  $region9: #{ssim_loss.1} parent=0 // pred_fallthru
    _
  // Predicated region
  $region10: #{ssim_loss.1} parent=0 // pred_check
    _
  $region11: #{ssim_loss.1} parent=0 // pred_check_branch
    %21 = sbr.rel (0) target = $region13
  $region12: #{ssim_loss.1} parent=0 // pred_region
    %s22 = sadd.s32 0, 0
    %s23 = smul.u32 2, %s22
    %p24 = scmp.lt.s32.totalorder %s23, 1
    %s25 = scalar_select %p24, %s23, 1
    %s26 = smul.addr %s25, 4
    %s27 = scalar_lea.vmem %s2, %s26
    %s28 = sadd.s32 0, 0
    %s29 = smul.u32 2, %s28
  $region13: #{ssim_loss.1} parent=0 // pred_fallthru
    _
  %s30 = sadd.s32 0, 0
  %s31 = smul.u32 2, %s30
  %p32 = scmp.lt.s32.totalorder %s31, 1
  %s33 = scalar_select %p32, %s31, 1
  %s34 = smul.addr %s33, 4
  %s35 = scalar_lea.vmem %s1, %s34
  %s36 = sadd.s32 0, 0
  %s37 = smul.u32 2, %s36
  %p38 = scmp.lt.s32.totalorder %s37, 1
  %s39 = scalar_select %p38, %s37, 1
  %s40 = smul.addr %s39, 4
  %s41 = scalar_lea.vmem %s2, %s40
  %s42 = sadd.s32 0, 0
  %s43 = smul.u32 2, %s42
  %p44 = scmp.lt.s32.totalorder %s43, 1
  %s45 = scalar_select %p44, %s43, 1
  %s46 = smul.addr %s45, 4
  %s47 = scalar_lea.vmem %s1, %s46
  %s48 = sadd.s32 0, 0
  %s49 = smul.u32 2, %s48
  %s50 = sadd.s32 0, 0
  %s51 = smul.u32 2, %s50
  %p52 = scmp.lt.s32.totalorder %s51, 1
  %s53 = scalar_select %p52, %s51, 1
  %s54 = smul.addr %s53, 4
  %s55 = scalar_lea.vmem %s2, %s54
  %s56 = sadd.s32 0, 0
  %s57 = smul.u32 2, %s56
  %p59 = scmp.eq.s32.totalorder 0, 0
  // Predicated region
  $region14: #{ssim_loss.1} parent=0 // pred_check
    %p60 = pneg %p59
  $region15: #{ssim_loss.1} parent=0 // pred_check_branch
    %62 = sbr.rel (%p60) target = $region17
  $region16: #{ssim_loss.1} parent=0 // pred_region
    %63 = vst [vmem:[%s3] sm:$0x1] 0.0
  $region17: #{ssim_loss.1} parent=0 // pred_fallthru
    _
  %v64 = vld [vmem:[%s0] sm:$0xf]
  %v65 = vld [vmem:[%s0 + $0x4] sm:$0xf]
  %v66 = vld [vmem:[%s0 + $0x8] sm:$0xf]
  %v67 = vld [vmem:[%s0 + $0xc] sm:$0xf]
  %v68 = vld [vmem:[%s0 + $0x10] sm:$0xf]
  %v69 = vld [vmem:[%s0 + $0x14] sm:$0xf]
  %v70 = vld [vmem:[%s0 + $0x18] sm:$0xf]
  %v71 = vld [vmem:[%s0 + $0x1c] sm:$0xf]
  %v72 = vld [vmem:[%s0 + $0x20] sm:$0xf]
  %v73 = vld [vmem:[%s0 + $0x24] sm:$0xf]
  %v74 = vld [vmem:[%s0 + $0x28] sm:$0xf]
  %v75 = vld [vmem:[%s0 + $0x2c] sm:$0xf]
  %v76 = vld [vmem:[%s0 + $0x30] sm:$0xf]
  %v77 = vld [vmem:[%s0 + $0x34] sm:$0xf]
  %v78 = vld [vmem:[%s0 + $0x38] sm:$0xf]
  %v79 = vld [vmem:[%s0 + $0x3c] sm:$0xf]
  %v80 = vld [vmem:[%s47] sm:$0xf]
  %v81 = vld [vmem:[%s47 + $0x4] sm:$0xf]
  %v82 = vunpack.c.l.bf16 %v80
  %v83 = vunpack.c.l.bf16 %v81
  %v84 = vld [vmem:[%s55] sm:$0xf]
  %v85 = vld [vmem:[%s55 + $0x4] sm:$0xf]
  %v86 = vunpack.c.l.bf16 %v84
  %v87 = vunpack.c.l.bf16 %v85
  %v90 = vunpack.c.l.b16 %v80
  %v91 = vunpack.c.l.b16 %v81
  %v92 = vpack.c.b16 %v91, %v90
  %v110 = vunpack.c.l.b16 %v64
  %v111 = vunpack.c.l.b16 %v65
  %v112 = vunpack.c.l.b16 %v66
  %v113 = vunpack.c.l.b16 %v67
  %v114 = vunpack.c.l.b16 %v68
  %v115 = vunpack.c.l.b16 %v69
  %v116 = vunpack.c.l.b16 %v70
  %v117 = vunpack.c.l.b16 %v71
  %v118 = vunpack.c.l.b16 %v72
  %v119 = vunpack.c.l.b16 %v73
  %v120 = vunpack.c.l.b16 %v74
  %v121 = vunpack.c.l.b16 %v75
  %v122 = vunpack.c.l.b16 %v76
  %v123 = vunpack.c.l.b16 %v77
  %v124 = vunpack.c.l.b16 %v78
  %v125 = vunpack.c.l.b16 %v79
  %v126 = vpack.c.b16 %v111, %v110
  %v127 = vpack.c.b16 %v113, %v112
  %v128 = vpack.c.b16 %v115, %v114
  %v129 = vpack.c.b16 %v117, %v116
  %v130 = vpack.c.b16 %v119, %v118
  %v131 = vpack.c.b16 %v121, %v120
  %v132 = vpack.c.b16 %v123, %v122
  %v133 = vpack.c.b16 %v125, %v124
  %142 = vmatprep.subr.bf16.mxu0 0
  %143 = vmatpush1.bf16.msra.mxu0 %v126
  %144 = vmatprep.subr.bf16.mxu0 0
  %145 = vmatpush1.bf16.msra.mxu0 %v127
  %146 = vmatprep.subr.bf16.mxu0 0
  %147 = vmatpush1.bf16.msra.mxu0 %v128
  %148 = vmatprep.subr.bf16.mxu0 0
  %149 = vmatpush1.bf16.msra.mxu0 %v129
  %150 = vmatprep.subr.bf16.mxu0 0
  %151 = vmatpush1.bf16.msra.mxu0 %v130
  %152 = vmatprep.subr.bf16.mxu0 0
  %153 = vmatpush1.bf16.msra.mxu0 %v131
  %154 = vmatprep.subr.bf16.mxu0 0
  %155 = vmatpush1.bf16.msra.mxu0 %v132
  %156 = vmatprep.subr.bf16.mxu0 0
  %157 = vmatpush1.bf16.msra.mxu0 %v133
  %158 = vmatprep.subr.bf16.mxu0 0
  %159 = vmatpush1.bf16.msra.mxu0 0
  %160 = vmatprep.subr.bf16.mxu0 0
  %161 = vmatpush1.bf16.msra.mxu0 0
  %162 = vmatprep.subr.bf16.mxu0 0
  %163 = vmatpush1.bf16.msra.mxu0 0
  %164 = vmatprep.subr.bf16.mxu0 0
  %165 = vmatpush1.bf16.msra.mxu0 0
  %166 = vmatprep.subr.bf16.mxu0 0
  %167 = vmatpush1.bf16.msra.mxu0 0
  %168 = vmatprep.subr.bf16.mxu0 0
  %169 = vmatpush1.bf16.msra.mxu0 0
  %170 = vmatprep.subr.bf16.mxu0 0
  %171 = vmatpush1.bf16.msra.mxu0 0
  %172 = vmatprep.subr.bf16.mxu0 0
  %173 = vmatpush1.bf16.msra.mxu0 0
  %174 = vmatprep.mubr.bf16.mxu0 0
  %175 = vmatmul.mubr.bf16.gmra.mrb[0].mxu0 %v92
  %v176 = vpop.f32.mrb[0].mxu0
  %v177 = vadd.f32 0.0, %v176
  %v178 = vpop.f32.mrb[0].mxu0
  %v179 = vpop.f32.mrb[0].mxu0
  %v180 = vadd.f32 0.0, %v179
  %v181 = vpop.f32.mrb[0].mxu0
  %182 = vdwg.mxu0
  %v185 = vunpack.c.l.b16 %v84
  %v186 = vunpack.c.l.b16 %v85
  %v187 = vpack.c.b16 %v186, %v185
  %189 = vmatprep.subr.bf16.mxu0 0
  %190 = vmatpush1.bf16.msra.mxu0 %v126
  %191 = vmatprep.subr.bf16.mxu0 0
  %192 = vmatpush1.bf16.msra.mxu0 %v127
  %193 = vmatprep.subr.bf16.mxu0 0
  %194 = vmatpush1.bf16.msra.mxu0 %v128
  %195 = vmatprep.subr.bf16.mxu0 0
  %196 = vmatpush1.bf16.msra.mxu0 %v129
  %197 = vmatprep.subr.bf16.mxu0 0
  %198 = vmatpush1.bf16.msra.mxu0 %v130
  %199 = vmatprep.subr.bf16.mxu0 0
  %200 = vmatpush1.bf16.msra.mxu0 %v131
  %201 = vmatprep.subr.bf16.mxu0 0
  %202 = vmatpush1.bf16.msra.mxu0 %v132
  %203 = vmatprep.subr.bf16.mxu0 0
  %204 = vmatpush1.bf16.msra.mxu0 %v133
  %205 = vmatprep.subr.bf16.mxu0 0
  %206 = vmatpush1.bf16.msra.mxu0 0
  %207 = vmatprep.subr.bf16.mxu0 0
  %208 = vmatpush1.bf16.msra.mxu0 0
  %209 = vmatprep.subr.bf16.mxu0 0
  %210 = vmatpush1.bf16.msra.mxu0 0
  %211 = vmatprep.subr.bf16.mxu0 0
  %212 = vmatpush1.bf16.msra.mxu0 0
  %213 = vmatprep.subr.bf16.mxu0 0
  %214 = vmatpush1.bf16.msra.mxu0 0
  %215 = vmatprep.subr.bf16.mxu0 0
  %216 = vmatpush1.bf16.msra.mxu0 0
  %217 = vmatprep.subr.bf16.mxu0 0
  %218 = vmatpush1.bf16.msra.mxu0 0
  %219 = vmatprep.subr.bf16.mxu0 0
  %220 = vmatpush1.bf16.msra.mxu0 0
  %221 = vmatprep.mubr.bf16.mxu0 0
  %222 = vmatmul.mubr.bf16.gmra.mrb[0].mxu0 %v187
  %v223 = vpop.f32.mrb[0].mxu0
  %v224 = vadd.f32 0.0, %v223
  %v225 = vpop.f32.mrb[0].mxu0
  %v226 = vpop.f32.mrb[0].mxu0
  %v227 = vadd.f32 0.0, %v226
  %v228 = vpop.f32.mrb[0].mxu0
  %229 = vdwg.mxu0
  %v230 = vmul.f32 %v82, %v82
  %v231 = vmul.f32 %v83, %v83
  %v232 = vpack.c.bf16 %v231, %v230
  %233 = vmatprep.subr.bf16.mxu0 0
  %234 = vmatpush1.bf16.msra.mxu0 %v126
  %235 = vmatprep.subr.bf16.mxu0 0
  %236 = vmatpush1.bf16.msra.mxu0 %v127
  %237 = vmatprep.subr.bf16.mxu0 0
  %238 = vmatpush1.bf16.msra.mxu0 %v128
  %239 = vmatprep.subr.bf16.mxu0 0
  %240 = vmatpush1.bf16.msra.mxu0 %v129
  %241 = vmatprep.subr.bf16.mxu0 0
  %242 = vmatpush1.bf16.msra.mxu0 %v130
  %243 = vmatprep.subr.bf16.mxu0 0
  %244 = vmatpush1.bf16.msra.mxu0 %v131
  %245 = vmatprep.subr.bf16.mxu0 0
  %246 = vmatpush1.bf16.msra.mxu0 %v132
  %247 = vmatprep.subr.bf16.mxu0 0
  %248 = vmatpush1.bf16.msra.mxu0 %v133
  %249 = vmatprep.subr.bf16.mxu0 0
  %250 = vmatpush1.bf16.msra.mxu0 0
  %251 = vmatprep.subr.bf16.mxu0 0
  %252 = vmatpush1.bf16.msra.mxu0 0
  %253 = vmatprep.subr.bf16.mxu0 0
  %254 = vmatpush1.bf16.msra.mxu0 0
  %255 = vmatprep.subr.bf16.mxu0 0
  %256 = vmatpush1.bf16.msra.mxu0 0
  %257 = vmatprep.subr.bf16.mxu0 0
  %258 = vmatpush1.bf16.msra.mxu0 0
  %259 = vmatprep.subr.bf16.mxu0 0
  %260 = vmatpush1.bf16.msra.mxu0 0
  %261 = vmatprep.subr.bf16.mxu0 0
  %262 = vmatpush1.bf16.msra.mxu0 0
  %263 = vmatprep.subr.bf16.mxu0 0
  %264 = vmatpush1.bf16.msra.mxu0 0
  %265 = vmatprep.mubr.bf16.mxu0 0
  %266 = vmatmul.mubr.bf16.gmra.mrb[0].mxu0 %v232
  %v267 = vpop.f32.mrb[0].mxu0
  %v268 = vadd.f32 0.0, %v267
  %v269 = vpop.f32.mrb[0].mxu0
  %v270 = vpop.f32.mrb[0].mxu0
  %v271 = vadd.f32 0.0, %v270
  %v272 = vpop.f32.mrb[0].mxu0
  %273 = vdwg.mxu0
  %v274 = vmul.f32 %v86, %v86
  %v275 = vmul.f32 %v87, %v87
  %v276 = vpack.c.bf16 %v275, %v274
  %277 = vmatprep.subr.bf16.mxu0 0
  %278 = vmatpush1.bf16.msra.mxu0 %v126
  %279 = vmatprep.subr.bf16.mxu0 0
  %280 = vmatpush1.bf16.msra.mxu0 %v127
  %281 = vmatprep.subr.bf16.mxu0 0
  %282 = vmatpush1.bf16.msra.mxu0 %v128
  %283 = vmatprep.subr.bf16.mxu0 0
  %284 = vmatpush1.bf16.msra.mxu0 %v129
  %285 = vmatprep.subr.bf16.mxu0 0
  %286 = vmatpush1.bf16.msra.mxu0 %v130
  %287 = vmatprep.subr.bf16.mxu0 0
  %288 = vmatpush1.bf16.msra.mxu0 %v131
  %289 = vmatprep.subr.bf16.mxu0 0
  %290 = vmatpush1.bf16.msra.mxu0 %v132
  %291 = vmatprep.subr.bf16.mxu0 0
  %292 = vmatpush1.bf16.msra.mxu0 %v133
  %293 = vmatprep.subr.bf16.mxu0 0
  %294 = vmatpush1.bf16.msra.mxu0 0
  %295 = vmatprep.subr.bf16.mxu0 0
  %296 = vmatpush1.bf16.msra.mxu0 0
  %297 = vmatprep.subr.bf16.mxu0 0
  %298 = vmatpush1.bf16.msra.mxu0 0
  %299 = vmatprep.subr.bf16.mxu0 0
  %300 = vmatpush1.bf16.msra.mxu0 0
  %301 = vmatprep.subr.bf16.mxu0 0
  %302 = vmatpush1.bf16.msra.mxu0 0
  %303 = vmatprep.subr.bf16.mxu0 0
  %304 = vmatpush1.bf16.msra.mxu0 0
  %305 = vmatprep.subr.bf16.mxu0 0
  %306 = vmatpush1.bf16.msra.mxu0 0
  %307 = vmatprep.subr.bf16.mxu0 0
  %308 = vmatpush1.bf16.msra.mxu0 0
  %309 = vmatprep.mubr.bf16.mxu0 0
  %310 = vmatmul.mubr.bf16.gmra.mrb[0].mxu0 %v276
  %v311 = vpop.f32.mrb[0].mxu0
  %v312 = vadd.f32 0.0, %v311
  %v313 = vpop.f32.mrb[0].mxu0
  %v314 = vpop.f32.mrb[0].mxu0
  %v315 = vadd.f32 0.0, %v314
  %v316 = vpop.f32.mrb[0].mxu0
  %317 = vdwg.mxu0
  %v318 = vmul.f32 %v82, %v86
  %v319 = vmul.f32 %v83, %v87
  %v320 = vpack.c.bf16 %v319, %v318
  %321 = vmatprep.subr.bf16.mxu0 0
  %322 = vmatpush1.bf16.msra.mxu0 %v126
  %323 = vmatprep.subr.bf16.mxu0 0
  %324 = vmatpush1.bf16.msra.mxu0 %v127
  %325 = vmatprep.subr.bf16.mxu0 0
  %326 = vmatpush1.bf16.msra.mxu0 %v128
  %327 = vmatprep.subr.bf16.mxu0 0
  %328 = vmatpush1.bf16.msra.mxu0 %v129
  %329 = vmatprep.subr.bf16.mxu0 0
  %330 = vmatpush1.bf16.msra.mxu0 %v130
  %331 = vmatprep.subr.bf16.mxu0 0
  %332 = vmatpush1.bf16.msra.mxu0 %v131
  %333 = vmatprep.subr.bf16.mxu0 0
  %334 = vmatpush1.bf16.msra.mxu0 %v132
  %335 = vmatprep.subr.bf16.mxu0 0
  %336 = vmatpush1.bf16.msra.mxu0 %v133
  %337 = vmatprep.subr.bf16.mxu0 0
  %338 = vmatpush1.bf16.msra.mxu0 0
  %339 = vmatprep.subr.bf16.mxu0 0
  %340 = vmatpush1.bf16.msra.mxu0 0
  %341 = vmatprep.subr.bf16.mxu0 0
  %342 = vmatpush1.bf16.msra.mxu0 0
  %343 = vmatprep.subr.bf16.mxu0 0
  %344 = vmatpush1.bf16.msra.mxu0 0
  %345 = vmatprep.subr.bf16.mxu0 0
  %346 = vmatpush1.bf16.msra.mxu0 0
  %347 = vmatprep.subr.bf16.mxu0 0
  %348 = vmatpush1.bf16.msra.mxu0 0
  %349 = vmatprep.subr.bf16.mxu0 0
  %350 = vmatpush1.bf16.msra.mxu0 0
  %351 = vmatprep.subr.bf16.mxu0 0
  %352 = vmatpush1.bf16.msra.mxu0 0
  %353 = vmatprep.mubr.bf16.mxu0 0
  %354 = vmatmul.mubr.bf16.gmra.mrb[0].mxu0 %v320
  %v355 = vpop.f32.mrb[0].mxu0
  %v356 = vadd.f32 0.0, %v355
  %v357 = vpop.f32.mrb[0].mxu0
  %v358 = vpop.f32.mrb[0].mxu0
  %v359 = vadd.f32 0.0, %v358
  %v360 = vpop.f32.mrb[0].mxu0
  %361 = vdwg.mxu0
  %v362 = vmul.f32 %v177, %v177
  %v363 = vmul.f32 %v180, %v180
  %v364 = vsub.f32 %v268, %v362
  %v365 = vsub.f32 %v271, %v363
  %v366 = vmul.f32 %v224, %v224
  %v367 = vmul.f32 %v227, %v227
  %v368 = vsub.f32 %v312, %v366
  %v369 = vsub.f32 %v315, %v367
  %v370 = vmul.f32 %v177, %v224
  %v371 = vmul.f32 %v180, %v227
  %v372 = vsub.f32 %v356, %v370
  %v373 = vsub.f32 %v359, %v371
  %v374 = vmul.f32 %v177, 2.0
  %v375 = vmul.f32 %v180, 2.0
  %v376 = vmul.f32 %v374, %v224
  %v377 = vmul.f32 %v375, %v227
  %v378 = vadd.f32 %v376, 0.0001
  %v379 = vadd.f32 %v377, 0.0001
  %v380 = vmul.f32 %v372, 2.0
  %v381 = vmul.f32 %v373, 2.0
  %v382 = vadd.f32 %v380, 0.0009
  %v383 = vadd.f32 %v381, 0.0009
  %v384 = vmul.f32 %v378, %v382
  %v385 = vmul.f32 %v379, %v383
  %v386 = vadd.f32 %v362, %v366
  %v387 = vadd.f32 %v363, %v367
  %v388 = vadd.f32 %v386, 0.0001
  %v389 = vadd.f32 %v387, 0.0001
  %v390 = vadd.f32 %v364, %v368
  %v391 = vadd.f32 %v365, %v369
  %v392 = vadd.f32 %v390, 0.0009
  %v393 = vadd.f32 %v391, 0.0009
  %v394 = vmul.f32 %v388, %v392
  %v395 = vmul.f32 %v389, %v393
  %v396 = vrcp.pop %v394
  %v397 = vrcp.pop %v395
  %v398 = vmul.f32 %v384, %v396
  %v399 = vmul.f32 %v385, %v397
  %s400 = sadd.s32 0, 0
  %s401 = smul.u32 %s400, 16
  %v402 = vlaneseq
  %v403 = vshrl.u32 %v402, 7
  %v404 = vadd.s32 %v403, 8
  %v405 = vstv %s401
  %v406 = vadd.s32 %v405, %v403
  %v407 = vadd.s32 %v405, %v404
  %v408 = vlaneseq
  %v409 = vand.u32 %v408, 127
  %vm410 = vcmp.lt.s32.totalorder %v406, 16
  %vm411 = vcmp.lt.s32.totalorder %v407, 16
  %vm412 = vcmp.eq.s32.totalorder %v406, 16
  %vm413 = vcmp.eq.s32.totalorder %v407, 16
  %vm414 = vcmp.lt.s32.totalorder %v409, 0
  %vm415 = vmand %vm412, %vm414
  %vm416 = vmand %vm413, %vm414
  %vm417 = vmor %vm410, %vm415
  %vm418 = vmor %vm411, %vm416
  %v419 = vsel %vm417, %v398, 0.0
  %v420 = vsel %vm418, %v399, 0.0
  %v421 = vld [vmem:[%s3] sm:$0x1]
  %v422 = vadd.f32 %v419, %v420
  %v423 = vrot.slane %v422, 4
  %v424 = vadd.f32 %v422, %v423
  %v425 = vrot.slane %v424, 2
  %v426 = vadd.f32 %v424, %v425
  %v427 = vrot.slane %v426, 1
  %v428 = vadd.f32 %v426, %v427
  %v429 = vadd.f32 %v421, %v428
  %430 = vst [vmem:[%s3] sm:$0x1] %v429
  // Predicated region
  $region18: #{ssim_loss.1} parent=0 // pred_check
    _
  $region19: #{ssim_loss.1} parent=0 // pred_check_branch
    %432 = sbr.rel (0) target = $region21
  $region20: #{ssim_loss.1} parent=0 // pred_region
    _
  $region21: #{ssim_loss.1} parent=0 // pred_fallthru
    _
  // Predicated region
  $region22: #{ssim_loss.1} parent=0 // pred_check
    _
  $region23: #{ssim_loss.1} parent=0 // pred_check_branch
    %434 = sbr.rel (0) target = $region25
  $region24: #{ssim_loss.1} parent=0 // pred_region
    _
  $region25: #{ssim_loss.1} parent=0 // pred_fallthru
    _

</llo_original>
